<compile_context>
chip_gen: v6e
topology: v6e:2x2x1
jax: 0.10.0
libtpu: 0.0.40
codegen_flags: <defaults>
</compile_context>

<pallas_src>
import jax
import jax.numpy as jnp
from jax.experimental import pallas as pl
from jax.experimental.pallas import tpu as pltpu


# ---------------------------------------------------------------------------
# Sizing helpers (lane/sublane padded VMEM math, generation aware)
# ---------------------------------------------------------------------------

def _rup(n, m):
    return ((n + m - 1) // m) * m


def _sublane(dtype):
    itemsize = jnp.dtype(dtype).itemsize
    return max(8, 8 * (4 // max(1, itemsize)))   # 8 (f32), 16 (bf16), 32 (i8)


def _padded_tile_bytes(rows, cols, dtype):
    itemsize = jnp.dtype(dtype).itemsize
    return _rup(rows, _sublane(dtype)) * _rup(cols, 128) * itemsize


def _physical_vmem_bytes():
    try:
        info = pltpu.get_tpu_info()
        v = int(getattr(info, "vmem_capacity_bytes", 0) or 0)
        if v > 0:
            return v
    except Exception:
        pass
    return 64 * 1024 * 1024   # conservative default (v7x per-core VMEM)


def _block_budget_bytes():
    # Double-buffered block budget: ~21 MiB on v7x (64 MiB physical),
    # 24 MiB on v5e/v6e (128 MiB physical).
    return min(24 * 1024 * 1024, _physical_vmem_bytes() // 3)


def _vmem_limit_bytes(footprint):
    phys = _physical_vmem_bytes()
    return int(min(phys * 3 // 4,
                   max(footprint + 8 * 1024 * 1024, 16 * 1024 * 1024)))


# ---------------------------------------------------------------------------
# Path A: native-layout batched kernel (lane dim = L, zero wrapper transposes)
# ---------------------------------------------------------------------------

def _nconv_kernel_native(at_ref, x_ref, o_ref):
    # at_ref: (W, V) VMEM-resident A^T; x_ref: (1, V, TL); o_ref: (1, W, TL)
    o_ref[0] = jnp.dot(
        at_ref[...], x_ref[0], preferred_element_type=jnp.float32
    ).astype(o_ref.dtype)


def _nconv_native(x, A):
    N, C, V, L = x.shape
    W = A.shape[1]
    B = N * C
    x3 = x.reshape(B, V, L)          # metadata-only reshape (no data movement)
    At = A.T                         # tiny (W, V), computed once

    budget = _block_budget_bytes()
    itemsize = jnp.dtype(x.dtype).itemsize
    sub = _sublane(x.dtype)
    # Double-buffered x + out bytes per 1 padded lane column.
    per_lane_col = max(1, 2 * (_rup(V, sub) + _rup(W, sub)) * itemsize)
    max_lanes = max(128, ((budget // per_lane_col) // 128) * 128)
    tl = L if L <= max_lanes else min(max_lanes, 16384)

    grid = (B, pl.cdiv(L, tl))
    footprint = (2 * (_padded_tile_bytes(V, tl, x.dtype)
                      + _padded_tile_bytes(W, tl, x.dtype))
                 + 2 * _padded_tile_bytes(W, V, At.dtype))

    out3 = pl.pallas_call(
        _nconv_kernel_native,
        out_shape=jax.ShapeDtypeStruct((B, W, L), x.dtype),
        grid_spec=pltpu.PrefetchScalarGridSpec(
            num_scalar_prefetch=0,
            grid=grid,
            in_specs=[
                # Constant index map: A^T stays resident in VMEM across grid.
                pl.BlockSpec((W, V), lambda b, l: (0, 0)),
                pl.BlockSpec((1, V, tl), lambda b, l: (b, 0, l)),
            ],
            out_specs=pl.BlockSpec((1, W, tl), lambda b, l: (b, 0, l)),
        ),
        compiler_params=pltpu.CompilerParams(
            dimension_semantics=("parallel", "parallel"),
            vmem_limit_bytes=_vmem_limit_bytes(footprint),
        ),
    )(At, x3)

    return out3.reshape(N, C, W, L)   # metadata-only reshape


# ---------------------------------------------------------------------------
# Path B: (M,V)@(V,W) streaming matmul (lane dim = W, for W >= 128 > L)
# ---------------------------------------------------------------------------

def _nconv_kernel_mw(x_ref, a_ref, o_ref):
    # x_ref: (TM, V); a_ref: (V, W); o_ref: (TM, W)
    o_ref[...] = jnp.dot(
        x_ref[...], a_ref[...], preferred_element_type=jnp.float32
    ).astype(o_ref.dtype)


def _choose_tm(M, V, W, dtype, budget):
    itemsize = jnp.dtype(dtype).itemsize
    # Lane-padded bytes per output row, double-buffered x block + out block.
    per_row = max(1, 2 * (_rup(V, 128) + _rup(W, 128)) * itemsize)
    tm = max(8, ((budget // per_row) // 8) * 8)
    tm = min(tm, 4096)                      # cap per review (v7x ~4096)
    if tm >= M:
        return M                            # full-extent block is always legal
    steps = -(-M // tm)
    if steps < 8:                           # keep the pipeline / megacore fed
        tm = max(512, min(tm, _rup(-(-M // 8), 8)))
        tm = min(tm, M)
    return tm


def _nconv_mw(x, A):
    N, C, V, L = x.shape
    W = A.shape[1]
    M = N * C * L

    tm = _choose_tm(M, V, W, x.dtype, _block_budget_bytes())
    grid = (pl.cdiv(M, tm),)

    # Layout plumbing: V on lanes for the kernel input.  allow_input_fusion
    # lets XLA fuse this transpose into the pallas_call input DMA.
    x2 = jnp.transpose(x, (0, 1, 3, 2)).reshape(M, V)

    footprint = (2 * (_padded_tile_bytes(tm, V, x.dtype)
                      + _padded_tile_bytes(tm, W, x.dtype))
                 + 2 * _padded_tile_bytes(V, W, A.dtype))

    out2 = pl.pallas_call(
        _nconv_kernel_mw,
        out_shape=jax.ShapeDtypeStruct((M, W), x.dtype),
        grid_spec=pltpu.PrefetchScalarGridSpec(
            num_scalar_prefetch=0,
            grid=grid,
            in_specs=[
                pl.BlockSpec((tm, V), lambda i: (i, 0)),
                # Constant index map: A stays resident in VMEM across the grid.
                pl.BlockSpec((V, W), lambda i: (0, 0)),
            ],
            out_specs=pl.BlockSpec((tm, W), lambda i: (i, 0)),
        ),
        compiler_params=pltpu.CompilerParams(
            dimension_semantics=("parallel",),
            vmem_limit_bytes=_vmem_limit_bytes(footprint),
            allow_input_fusion=[True, False],   # fuse ncvl->(M,V) into input DMA
        ),
    )(x2, A)

    # (M, W) -> (N, C, L, W) -> (N, C, W, L)
    return jnp.transpose(out2.reshape(N, C, L, W), (0, 1, 3, 2))


# ---------------------------------------------------------------------------
# Public wrapper
# ---------------------------------------------------------------------------

def nconv(x, A):
    """x: (N, C, V, L), A: (V, W) -> (N, C, W, L); torch.einsum('ncvl,vw->ncwl')."""
    N, C, V, L = x.shape
    Va, W = A.shape
    assert V == Va, "A's first dim must match x's node dim V"
    if A.dtype != x.dtype:
        A = A.astype(x.dtype)
    # Lane-density heuristic: put the longer of (L, W) on the lane (last) dim
    # of the kernel output.  When L wins we also get native ncvl/ncwl layouts
    # with zero wrapper transposes (the big HBM-traffic lever).
    if L >= W or L >= 128:
        return _nconv_native(x, A)
    return _nconv_mw(x, A)


if __name__ == "__main__":
    key = jax.random.PRNGKey(0)
    k1, k2, k3, k4 = jax.random.split(key, 4)

    # Primary check: native-layout path (L >= W), small shapes consistent with
    # nconv's forward: x (N, C, V, L), A (V, W).
    N, C, V, L, W = 2, 4, 8, 16, 8
    x = jax.random.normal(k1, (N, C, V, L), dtype=jnp.float32)
    A = jax.random.normal(k2, (V, W), dtype=jnp.float32)
    out = jax.block_until_ready(nconv(x, A))
    ref = jnp.einsum("ncvl,vw->ncwl", x, A)
    assert out.shape == (N, C, W, L)
    assert jnp.allclose(out, ref, atol=1e-4, rtol=1e-4)

    # Secondary check: wide-W path (W >= 128 > L) exercising the (M,V)@(V,W)
    # orientation with the fused input transpose.
    N2, C2, V2, L2, W2 = 2, 3, 16, 8, 128
    x2 = jax.random.normal(k3, (N2, C2, V2, L2), dtype=jnp.float32)
    A2 = jax.random.normal(k4, (V2, W2), dtype=jnp.float32)
    out2 = jax.block_until_ready(nconv(x2, A2))
    ref2 = jnp.einsum("ncvl,vw->ncwl", x2, A2)
    assert out2.shape == (N2, C2, W2, L2)
    assert jnp.allclose(out2, ref2, atol=1e-4, rtol=1e-4)

    print("KERNEL_OK")
</pallas_src>

<mosaic_0001>
module attributes {stable_mosaic.version = 11 : i64} {
  func.func @_nconv_kernel_native(%arg0: i32, %arg1: i32, %arg2: memref<8x8xf32, #tpu.memory_space<vmem>>, %arg3: memref<1x8x16xf32, #tpu.memory_space<vmem>>, %arg4: memref<1x8x16xf32, #tpu.memory_space<vmem>>) attributes {dimension_semantics = [#tpu.dimension_semantics<parallel>, #tpu.dimension_semantics<parallel>], iteration_bounds = array<i64: 8, 1>, scalar_prefetch = 0 : i64, scratch_operands = 0 : i64, tpu.core_type = #tpu.core_type<tc>, window_params = [{pipeline_mode = #tpu.pipeline_mode<synchronous>, transform_indices = @transform_0, window_bounds = array<i64: 8, 8>}, {transform_indices = @transform_1, window_bounds = array<i64: 1, 8, 16>}, {transform_indices = @transform_2, window_bounds = array<i64: 1, 8, 16>}]} {
    %c0 = arith.constant 0 : index
    %c0_0 = arith.constant 0 : index
    %0 = vector.load %arg2[%c0, %c0_0] : memref<8x8xf32, #tpu.memory_space<vmem>>, vector<8x8xf32>
    %c0_1 = arith.constant 0 : index
    %c0_2 = arith.constant 0 : index
    %c0_3 = arith.constant 0 : index
    %1 = vector.load %arg3[%c0_1, %c0_2, %c0_3] : memref<1x8x16xf32, #tpu.memory_space<vmem>>, vector<1x8x16xf32>
    %2 = vector.shape_cast %1 : vector<1x8x16xf32> to vector<8x16xf32>
    %cst = arith.constant dense<0.000000e+00> : vector<8x16xf32>
    %3 = tpu.matmul %0, %2, %cst {dimension_numbers = #tpu.dot_dimension_numbers<[1], [0], [0], [1], [0, 0, 1, 1], [], []>} : vector<8x8xf32>, vector<8x16xf32>, vector<8x16xf32> -> vector<8x16xf32>
    %c0_4 = arith.constant 0 : index
    %c0_5 = arith.constant 0 : index
    %c0_6 = arith.constant 0 : index
    %4 = vector.load %arg4[%c0_4, %c0_5, %c0_6] : memref<1x8x16xf32, #tpu.memory_space<vmem>>, vector<1x8x16xf32>
    %5 = vector.shape_cast %4 : vector<1x8x16xf32> to vector<8x16xf32>
    %6 = vector.shape_cast %3 : vector<8x16xf32> to vector<1x8x16xf32>
    tpu.vector_store %arg4[%c0_4, %c0_5, %c0_6], %6 {strides = array<i32>} : memref<1x8x16xf32, #tpu.memory_space<vmem>>, vector<1x8x16xf32>,
    return
  }
  func.func @transform_0(%arg0: i32, %arg1: i32) -> (i32, i32) {
    %c0_i32 = arith.constant 0 : i32
    %c0_i32_0 = arith.constant 0 : i32
    %c0_i32_1 = arith.constant 0 : i32
    return %c0_i32, %c0_i32_0 : i32, i32
  }
  func.func @transform_1(%arg0: i32, %arg1: i32) -> (i32, i32, i32) {
    %c0_i32 = arith.constant 0 : i32
    %c0_i32_0 = arith.constant 0 : i32
    return %arg0, %c0_i32, %arg1 : i32, i32, i32
  }
  func.func @transform_2(%arg0: i32, %arg1: i32) -> (i32, i32, i32) {
    %c0_i32 = arith.constant 0 : i32
    %c0_i32_0 = arith.constant 0 : i32
    return %arg0, %c0_i32, %arg1 : i32, i32, i32
  }
}

</mosaic_0001>

<llo_original>
// kernel: tpu_custom_call.1
$region0: #{tpu_custom_call.1}
  #allocation0 [shape = 'u32[]', space=smem, size = 0x4, offset = 0x4, fixed_abs, tag = 'smem constant byte address 0x4 - core index']
  #allocation1 [shape = 'u32[144,128]{1,0:T(1,128)}', space=vmem, size = 0x12000, scoped, tag = 'internal scratch']
  %s0 = inlined_call_operand.hbm [shape: f32[8,8], index: 0, kind: input, shape index: {}]
  %s1 = inlined_call_operand.hbm [shape: f32[8,8,16], index: 1, kind: input, shape index: {}]
  %s2 = inlined_call_operand.hbm [shape: f32[8,8,16], index: 2, kind: output, shape index: {}]
  %s3 = sld [smem:[#allocation0]]
  $region49: #{tpu_custom_call.1} parent=0
    _
  %s5 = ssub.s32 1, %s3
  %s6 = scalar_select 0, %s5, %s3
  $region1: #{tpu_custom_call.1} parent=0
    #allocation2 [shape = 'u8[4096]{0}', space=vmem, size = 0x1000, scoped, tag = 'input window, operand 0, single buffered']
    #allocation3 [shape = 's32[2]{0}', space=sflag, size = 0x8, scoped, tag = 'scoped memory for tpu_custom_call.1']
    #allocation4 [shape = 's32[2]{0}', space=sflag, size = 0x8, scoped, tag = 'scoped memory for tpu_custom_call.1']
    #allocation5 [shape = 'u8[8192]{0}', space=vmem, size = 0x2000, scoped, tag = 'input window, operand 1']
    #allocation6 [shape = 's32[2]{0}', space=sflag, size = 0x8, scoped, tag = 'scoped memory for tpu_custom_call.1']
    #allocation7 [shape = 'u8[8192]{0}', space=vmem, size = 0x2000, scoped, tag = 'output window, operand 0']
    %7 = vsyncpa [#allocation3], 0
    %8 = vsyncpa [#allocation6], 0
    %s9 = scalar_lea.sflag [#allocation6], 1
    %10 = vsyncpa %s9, 0
    %11 = vsyncpa [#allocation4], 0
    %s12 = scalar_lea.sflag [#allocation4], 1
    %13 = vsyncpa %s12, 0
    loop: start=0, step=1, limit=10
    $region2: #{tpu_custom_call.1} parent=1 // loop_pre_header
      _
    $region3: #{tpu_custom_call.1} parent=1 // loop_header
      %s15 = sphi 0, %s19
      %p16 = scmp.ge.s32.totalorder %s15, 10
      %s22 = sphi 0, %s34
      %s23 = sphi 0, %s30
      %s24 = sphi 0, %s22
      %s25 = sphi 0, %s23
      %s26 = sphi 0, %s24
      %s27 = sphi 0, %s25
      %s35 = sphi 0, %s35
      %s37 = sphi 0, %s35
      %s38 = sphi 0, %s37
      %s52 = sphi 0, %s38
      %s60 = sphi 0, %s62
      %s63 = sphi 0, %s60
      %s64 = sphi 0, %s63
      %s80 = sphi 0, %s64
      %s88 = sphi 0, %s90
      %s91 = sphi 0, %s88
      %s92 = sphi 0, %s91
      %s108 = sphi 0, %s92
    $region4: #{tpu_custom_call.1} parent=1 // loop_header_branch
      %18 = sbr.rel (%p16) target = $region8
    $region5: #{tpu_custom_call.1} parent=1 // loop_body
      %s20 = ssub.s32 %s15, 1
      %s21 = ssub.s32 %s15, 2
      %s28 = sadd.s32 1, %s23
      %p29 = scmp.ge.s32.totalorder %s28, 1
      %s30 = scalar_select %p29, 0, %s28
      %s31 = sadd.s32 1, %s22
      %s32 = scalar_select %p29, %s31, %s22
      %p33 = scmp.ge.s32.totalorder %s32, 8
      %s34 = scalar_select %p33, 0, %s32
      %s36 = sadd.s32 %s35, 1
      %p39 = scmp.eq.s32.totalorder %s15, 7
      %p40 = scmp.ne.s32.totalorder %s35, %s37
      %p41 = scmp.eq.s32.totalorder %s15, 0
      %p42 = por %p40, %p41
      %p43 = scmp.ne.s32.totalorder %s35, %s37
      %p44 = scmp.eq.s32.totalorder %s20, 7
      %p45 = por %p43, %p44
      %p46 = scmp.ne.s32.totalorder %s37, %s38
      %p47 = scmp.eq.s32.totalorder %s20, 0
      %p48 = por %p46, %p47
      %p49 = scmp.ne.s32.totalorder %s37, %s38
      %p50 = scmp.eq.s32.totalorder %s21, 7
      %p51 = por %p49, %p50
      %p53 = scmp.ne.s32.totalorder %s38, %s52
      %p54 = scmp.eq.s32.totalorder %s21, 0
      %p55 = por %p53, %p54
      %s56 = ssub.s32 %s22, %s34
      %s57 = ssub.s32 %s23, %s30
      %s58 = sor.u32 %s56, %s57
      %p59 = scmp.eq.s32.totalorder %s58, 0
      %s61 = sadd.s32 %s60, 1
      %s62 = scalar_select %p59, %s60, %s61
      %p65 = pneg %p59
      %p66 = scmp.eq.s32.totalorder %s15, 7
      %p67 = por %p65, %p66
      %p68 = scmp.ne.s32.totalorder %s60, %s63
      %p69 = scmp.eq.s32.totalorder %s15, 0
      %p70 = por %p68, %p69
      %p71 = scmp.ne.s32.totalorder %s60, %s63
      %p72 = scmp.eq.s32.totalorder %s20, 7
      %p73 = por %p71, %p72
      %p74 = scmp.ne.s32.totalorder %s63, %s64
      %p75 = scmp.eq.s32.totalorder %s20, 0
      %p76 = por %p74, %p75
      %p77 = scmp.ne.s32.totalorder %s63, %s64
      %p78 = scmp.eq.s32.totalorder %s21, 7
      %p79 = por %p77, %p78
      %p81 = scmp.ne.s32.totalorder %s64, %s80
      %p82 = scmp.eq.s32.totalorder %s21, 0
      %p83 = por %p81, %p82
      %s84 = ssub.s32 %s22, %s34
      %s85 = ssub.s32 %s23, %s30
      %s86 = sor.u32 %s84, %s85
      %p87 = scmp.eq.s32.totalorder %s86, 0
      %s89 = sadd.s32 %s88, 1
      %s90 = scalar_select %p87, %s88, %s89
      %p93 = pneg %p87
      %p94 = scmp.eq.s32.totalorder %s15, 7
      %p95 = por %p93, %p94
      %p96 = scmp.ne.s32.totalorder %s88, %s91
      %p97 = scmp.eq.s32.totalorder %s15, 0
      %p98 = por %p96, %p97
      %p99 = scmp.ne.s32.totalorder %s88, %s91
      %p100 = scmp.eq.s32.totalorder %s20, 7
      %p101 = por %p99, %p100
      %p102 = scmp.ne.s32.totalorder %s91, %s92
      %p103 = scmp.eq.s32.totalorder %s20, 0
      %p104 = por %p102, %p103
      %p105 = scmp.ne.s32.totalorder %s91, %s92
      %p106 = scmp.eq.s32.totalorder %s21, 7
      %p107 = por %p105, %p106
      %p109 = scmp.ne.s32.totalorder %s92, %s108
      %p110 = scmp.eq.s32.totalorder %s21, 0
      %p111 = por %p109, %p110
      %p112 = scmp.le.s32.totalorder 1, %s15
      %p113 = scmp.lt.s32.totalorder %s15, 9
      %p114 = pnand %p112, %p113
      %p115 = pneg %p114
      // Predicated region
      $region9: #{tpu_custom_call.1} parent=5 // pred_check
        _
      $region10: #{tpu_custom_call.1} parent=5 // pred_check_branch
        %117 = sbr.rel (%p114) target = $region12
      $region11: #{tpu_custom_call.1} parent=5 // pred_region
        %s118 = ssub.s32 %s15, 1
        // Predicated region
        $region13: #{tpu_custom_call.1} parent=11 // pred_check
          %p119 = pneg %p48
        $region14: #{tpu_custom_call.1} parent=11 // pred_check_branch
          %121 = sbr.rel (%p119) target = $region16
        $region15: #{tpu_custom_call.1} parent=11 // pred_region
          %s123 = ssub.s32 128, 128
          %124 = vsyncadd [#allocation3], %s123
          %s126 = sshll.u32 [#allocation2], 4
          %s127 = int_to_ptr.vmem [resolvable:$true] %s126
          %129 = dma.hbm_to_vmem [thread:$0]  %s0, 128, %s127, [#allocation3]
        $region16: #{tpu_custom_call.1} parent=11 // pred_fallthru
          _
      $region12: #{tpu_custom_call.1} parent=5 // pred_fallthru
        _
      %p130 = scmp.lt.s32.totalorder %s15, 8
      // Predicated region
      $region17: #{tpu_custom_call.1} parent=5 // pred_check
        %p131 = pneg %p130
      $region18: #{tpu_custom_call.1} parent=5 // pred_check_branch
        %133 = sbr.rel (%p131) target = $region20
      $region19: #{tpu_custom_call.1} parent=5 // pred_region
        // Predicated region
        $region21: #{tpu_custom_call.1} parent=19 // pred_check
          %p134 = pneg %p70
        $region22: #{tpu_custom_call.1} parent=19 // pred_check_branch
          %136 = sbr.rel (%p134) target = $region24
        $region23: #{tpu_custom_call.1} parent=19 // pred_region
          %s137 = sand.u32 %s60, 1
          %s138 = scalar_lea.sflag [#allocation6], %s137
          %s139 = sand.u32 %s60, 1
          %s140 = smul.addr %s139, 8
          %s141 = scalar_lea.vmem [#allocation5], %s140
          %s143 = ssub.s32 128, 128
          %144 = vsyncadd %s138, %s143
          %s145 = sadd.s32 %s23, %s22
          %s146 = smul.addr %s145, 128
          %s147 = scalar_lea.hbm %s1, %s146
          %s149 = sshll.u32 %s141, 4
          %s150 = int_to_ptr.vmem [resolvable:$true] %s149
          %152 = dma.hbm_to_vmem [thread:$0]  %s147, 128, %s150, %s138
        $region24: #{tpu_custom_call.1} parent=19 // pred_fallthru
          _
      $region20: #{tpu_custom_call.1} parent=5 // pred_fallthru
        _
      %p153 = scmp.le.s32.totalorder 1, %s15
      %p154 = scmp.lt.s32.totalorder %s15, 9
      %p155 = pnand %p153, %p154
      %p156 = pneg %p155
      // Predicated region
      $region25: #{tpu_custom_call.1} parent=5 // pred_check
        _
      $region26: #{tpu_custom_call.1} parent=5 // pred_check_branch
        %158 = sbr.rel (%p155) target = $region28
      $region27: #{tpu_custom_call.1} parent=5 // pred_region
        %s159 = ssub.s32 %s15, 1
        // Predicated region
        $region29: #{tpu_custom_call.1} parent=27 // pred_check
          %p160 = pneg %p48
        $region30: #{tpu_custom_call.1} parent=27 // pred_check_branch
          %162 = sbr.rel (%p160) target = $region32
        $region31: #{tpu_custom_call.1} parent=27 // pred_region
          %163 = dma.done [#allocation3], 128
        $region32: #{tpu_custom_call.1} parent=27 // pred_fallthru
          _
        %s164 = sand.u32 %s63, 1
        %s165 = scalar_lea.sflag [#allocation6], %s164
        %s166 = sand.u32 %s63, 1
        %s167 = smul.addr %s166, 8
        %s168 = scalar_lea.vmem [#allocation5], %s167
        // Predicated region
        $region33: #{tpu_custom_call.1} parent=27 // pred_check
          %p169 = pneg %p76
        $region34: #{tpu_custom_call.1} parent=27 // pred_check_branch
          %171 = sbr.rel (%p169) target = $region36
        $region35: #{tpu_custom_call.1} parent=27 // pred_region
          %172 = dma.done %s165, 128
        $region36: #{tpu_custom_call.1} parent=27 // pred_fallthru
          _
        %p173 = pneg %p48
        %p174 = pneg %p45
        %s175 = sand.u32 %s63, 1
        %s176 = scalar_lea.sflag [#allocation6], %s175
        %s177 = sand.u32 %s63, 1
        %s178 = smul.addr %s177, 8
        %s179 = scalar_lea.vmem [#allocation5], %s178
        %p180 = pneg %p76
        %p181 = pneg %p73
        %p182 = pneg %p104
        %p183 = pneg %p101
        %s184 = sand.u32 %s91, 1
        %s185 = scalar_lea.sflag [#allocation4], %s184
        %s186 = sand.u32 %s91, 1
        %s187 = smul.addr %s186, 8
        %s188 = scalar_lea.vmem [#allocation7], %s187
        %v189 = vld [vmem:[#allocation2] sm:$0xff]
        %v190 = vld [vmem:[%s168] sm:$0xff]
        %vm191 = vcmask 64512
        %v193 = vsel %vm191, %v189, 0
        %195 = vmatprep.subr.mxu0 0.0
        %196 = vmatpush1.msra.mxu0 0.0
        %197 = vmatprep.subr.mxu0 0.0
        %198 = vmatpush1.msra.mxu0 0.0
        %199 = vmatprep.subr.mxu0 0.0
        %200 = vmatpush1.msra.mxu0 0.0
        %201 = vmatprep.subr.mxu0 0.0
        %202 = vmatpush1.msra.mxu0 0.0
        %203 = vmatprep.subr.mxu0 0.0
        %204 = vmatpush1.msra.mxu0 0.0
        %205 = vmatprep.subr.mxu0 0.0
        %206 = vmatpush1.msra.mxu0 0.0
        %207 = vmatprep.subr.mxu0 0.0
        %208 = vmatpush1.msra.mxu0 0.0
        %209 = vmatprep.subr.mxu0 0.0
        %210 = vmatpush1.msra.mxu0 0.0
        %211 = vmatprep.subr.mxu0 0.0
        %212 = vmatpush1.msra.mxu0 0.0
        %213 = vmatprep.subr.mxu0 0.0
        %214 = vmatpush1.msra.mxu0 0.0
        %215 = vmatprep.subr.mxu0 0.0
        %216 = vmatpush1.msra.mxu0 0.0
        %217 = vmatprep.subr.mxu0 0.0
        %218 = vmatpush1.msra.mxu0 0.0
        %219 = vmatprep.subr.mxu0 0.0
        %220 = vmatpush1.msra.mxu0 0.0
        %221 = vmatprep.subr.mxu0 0.0
        %222 = vmatpush1.msra.mxu0 0.0
        %223 = vmatprep.subr.mxu0 0.0
        %224 = vmatpush1.msra.mxu0 0.0
        %225 = vmatprep.subr.mxu0 0.0
        %226 = vmatpush1.msra.mxu0 %v190
        %227 = vmatprep.subr.mxu0 0.0
        %228 = vmatpush2.msra.mxu0 0.0
        %229 = vmatprep.subr.mxu0 0.0
        %230 = vmatpush2.msra.mxu0 0.0
        %231 = vmatprep.subr.mxu0 0.0
        %232 = vmatpush2.msra.mxu0 0.0
        %233 = vmatprep.subr.mxu0 0.0
        %234 = vmatpush2.msra.mxu0 0.0
        %235 = vmatprep.subr.mxu0 0.0
        %236 = vmatpush2.msra.mxu0 0.0
        %237 = vmatprep.subr.mxu0 0.0
        %238 = vmatpush2.msra.mxu0 0.0
        %239 = vmatprep.subr.mxu0 0.0
        %240 = vmatpush2.msra.mxu0 0.0
        %241 = vmatprep.subr.mxu0 0.0
        %242 = vmatpush2.msra.mxu0 0.0
        %243 = vmatprep.subr.mxu0 0.0
        %244 = vmatpush2.msra.mxu0 0.0
        %245 = vmatprep.subr.mxu0 0.0
        %246 = vmatpush2.msra.mxu0 0.0
        %247 = vmatprep.subr.mxu0 0.0
        %248 = vmatpush2.msra.mxu0 0.0
        %249 = vmatprep.subr.mxu0 0.0
        %250 = vmatpush2.msra.mxu0 0.0
        %251 = vmatprep.subr.mxu0 0.0
        %252 = vmatpush2.msra.mxu0 0.0
        %253 = vmatprep.subr.mxu0 0.0
        %254 = vmatpush2.msra.mxu0 0.0
        %255 = vmatprep.subr.mxu0 0.0
        %256 = vmatpush2.msra.mxu0 0.0
        %257 = vmatprep.subr.mxu0 0.0
        %258 = vmatpush2.msra.mxu0 0.0
        %259 = vmatprep.mubr.f32.mxu0 0.0
        %260 = vmatmul.mubr.f32.gmra.mxu0 %v193
        %v261 = vpop.f32.mrf.mxu0
        %v262 = vadd.f32 0.0, %v261
        %v263 = vpop.f32.mrf.mxu0
        %264 = vdwg.mxu0
        %vm265 = vcmask 130048
        %266 = vst.msk [vmem:[%s188] sm:$0xff] %vm265, %v262
        %s267 = sand.u32 %s91, 1
        %s268 = scalar_lea.sflag [#allocation4], %s267
        %s269 = sand.u32 %s91, 1
        %s270 = smul.addr %s269, 8
        %s271 = scalar_lea.vmem [#allocation7], %s270
        // Predicated region
        $region37: #{tpu_custom_call.1} parent=27 // pred_check
          %p272 = pneg %p101
        $region38: #{tpu_custom_call.1} parent=27 // pred_check_branch
          %274 = sbr.rel (%p272) target = $region40
        $region39: #{tpu_custom_call.1} parent=27 // pred_region
          %s276 = ssub.s32 128, 128
          %277 = vsyncadd %s268, %s276
          %s278 = sadd.s32 %s25, %s24
          %s279 = smul.addr %s278, 128
          %s280 = scalar_lea.hbm %s2, %s279
          %s282 = sshll.u32 %s271, 4
          %s283 = int_to_ptr.vmem [resolvable:$true] %s282
          %285 = dma.vmem_to_hbm [thread:$0]  %s283, 128, %s280, %s268
        $region40: #{tpu_custom_call.1} parent=27 // pred_fallthru
          _
      $region28: #{tpu_custom_call.1} parent=5 // pred_fallthru
        _
      %p286 = scmp.le.s32.totalorder 2, %s15
      // Predicated region
      $region41: #{tpu_custom_call.1} parent=5 // pred_check
        %p287 = pneg %p286
      $region42: #{tpu_custom_call.1} parent=5 // pred_check_branch
        %289 = sbr.rel (%p287) target = $region44
      $region43: #{tpu_custom_call.1} parent=5 // pred_region
        %s290 = ssub.s32 %s15, 2
        // Predicated region
        $region45: #{tpu_custom_call.1} parent=43 // pred_check
          %p291 = pneg %p107
        $region46: #{tpu_custom_call.1} parent=43 // pred_check_branch
          %293 = sbr.rel (%p291) target = $region48
        $region47: #{tpu_custom_call.1} parent=43 // pred_region
          %s294 = sand.u32 %s92, 1
          %s295 = scalar_lea.sflag [#allocation4], %s294
          %s296 = sand.u32 %s92, 1
          %s297 = smul.addr %s296, 8
          %s298 = scalar_lea.vmem [#allocation7], %s297
          %299 = dma.done %s295, 128
        $region48: #{tpu_custom_call.1} parent=43 // pred_fallthru
          _
      $region44: #{tpu_custom_call.1} parent=5 // pred_fallthru
        _
    $region6: #{tpu_custom_call.1} parent=1 // loop_footer
      %s19 = sadd.s32 1, %s15
    $region7: #{tpu_custom_call.1} parent=1 // loop_footer_branch
      %14 = sbr.rel target = $region3
    $region8: #{tpu_custom_call.1} parent=1 // loop_exit
      _
    %300 = vsyncpa [#allocation3], 1
    %s301 = scalar_lea.sflag [#allocation3], 1
    %302 = vsyncpa %s301, 1
    %303 = vsyncpa [#allocation6], 1
    %s304 = scalar_lea.sflag [#allocation6], 1
    %305 = vsyncpa %s304, 1
    %306 = vsyncpa [#allocation4], 1
    %s307 = scalar_lea.sflag [#allocation4], 1
    %308 = vsyncpa %s307, 1

</llo_original>
